<compile_context>
chip_gen: v7x
topology: tpu7x:2x2x1
jax: 0.10.0
libtpu: 0.0.40
codegen_flags: <defaults>
</compile_context>

<pallas_src>
import jax
import jax.numpy as jnp
from jax.experimental import pallas as pl
from jax.experimental.pallas import tpu as pltpu

HID_SIZE = 64


def _round_up(x, m):
    return (x + m - 1) // m * m


def _num_tensorcores():
    """Best-effort per-chip TensorCore count (v7x=2, v5e/v6e=1); defaults to 1."""
    try:
        info = pltpu.get_tpu_info()
    except Exception:
        return 1
    for name in ("num_cores", "core_count", "num_tensorcores",
                 "tensorcores_per_chip", "cores_per_chip"):
        v = getattr(info, name, None)
        if isinstance(v, int) and v > 0:
            return v
    return 1


def critic_kernel(x_ref, w1_ref, b1_ref, w2_ref, b2_ref, w3_ref, b3_ref, o_ref):
    """3-layer MLP on one (batch_tile, obs) tile; weights are VMEM-resident."""
    # Cast x to the weight dtype *after* the tile load (no wrapper HBM pass).
    x = x_ref[...].astype(w1_ref.dtype)

    # Layer 1: (bt, obs) @ (obs, 64) on the MXU, f32 accumulate.  Mosaic pads
    # the K=obs contraction internally; no wrapper-side obs padding needed.
    h1 = jnp.dot(x, w1_ref[...], preferred_element_type=jnp.float32) + b1_ref[...]
    h1 = jnp.maximum(h1, 0.0)

    # Layer 2: (bt, 64) @ (64, 64).
    h2 = jnp.dot(h1.astype(w2_ref.dtype), w2_ref[...],
                 preferred_element_type=jnp.float32) + b2_ref[...]
    h2 = jnp.maximum(h2, 0.0)

    # Layer 3 (64 -> 1): contract w3_row's feature dim with h2's feature dim
    # (q @ k^T-style dot_general).  Result is a lane-dense (1, batch_tile) row,
    # avoiding a 1-column MXU output and masked 1/128-lane stores.
    out_row = jax.lax.dot_general(
        w3_ref[...], h2.astype(w3_ref.dtype),
        dimension_numbers=(((1,), (1,)), ((), ())),
        preferred_element_type=jnp.float32,
    )
    o_ref[...] = (out_row + b3_ref[...]).astype(o_ref.dtype)


def _auto_batch_tile(B, obs, itemsize, n_tc):
    # ~12 MiB budget for the double-buffered x tile: leaves room for the
    # resident weights under v5e's 16 MiB scoped-VMEM default (v6e/v7x: 32 MiB).
    vmem_budget = 12 * 1024 * 1024
    per_row = 2 * obs * itemsize                       # double-buffered x rows
    max_rows = max(128, int(vmem_budget // per_row) // 128 * 128)
    cap = min(4096, max_rows)   # 4096 rows amortize the ~0.35us/step overhead (v7x)
    if B <= cap:
        if n_tc >= 2 and B >= 256:
            # Two tiles so both TensorCores of a multi-TC chip get a grid step.
            return _round_up((B + 1) // 2, 128)
        return B                                       # single tile = whole batch
    return cap


def model_critic_forward(x, params, *, batch_tile=None, use_bf16=False):
    """x: (B, obs_size) -> (B, 1) float32."""
    w1, b1, w2, b2, w3, b3 = params
    B, obs = x.shape
    assert w1.shape == (obs, HID_SIZE)

    # Optional bf16 weights (weights only; x is never rewritten in HBM -- it is
    # cast to the weight dtype inside the kernel after the tile load).
    if use_bf16:
        w1 = w1.astype(jnp.bfloat16)
        w2 = w2.astype(jnp.bfloat16)
        w3 = w3.astype(jnp.bfloat16)
        # biases stay f32: bias add / ReLU remain f32 VPU work (v5e-safe).

    if batch_tile is None:
        batch_tile = _auto_batch_tile(B, obs, x.dtype.itemsize, _num_tensorcores())
    batch_tile = int(batch_tile)
    if batch_tile >= B:
        batch_tile = B           # single tile: block dims equal the full array dims
    else:
        # Interior output blocks live on the lane axis -> 128 alignment; this
        # also satisfies the sublane (8) rule for the x tile.
        batch_tile = _round_up(batch_tile, 128)
        if batch_tile >= B:
            batch_tile = B
    num_tiles = pl.cdiv(B, batch_tile)   # trailing partial block is clipped by Pallas

    # Grid-invariant weights/biases: fully VMEM-resident, unblocked (no
    # per-step pipelining / double buffering).
    resident = pl.BlockSpec(memory_space=pltpu.MemorySpace.VMEM)

    out_slab = pl.pallas_call(
        critic_kernel,
        # Lane-dense output slab: batch lives on the lane axis.
        out_shape=jax.ShapeDtypeStruct((1, B), jnp.float32),
        grid_spec=pltpu.PrefetchScalarGridSpec(
            num_scalar_prefetch=0,
            grid=(num_tiles,),
            in_specs=[
                # Last dim == full obs dim -> no 128-divisibility requirement.
                pl.BlockSpec((batch_tile, obs), lambda i: (i, 0)),   # x tile
                resident, resident,   # w1, b1
                resident, resident,   # w2, b2
                resident, resident,   # w3, b3
            ],
            out_specs=pl.BlockSpec((1, batch_tile), lambda i: (0, i)),
        ),
        compiler_params=pltpu.CompilerParams(
            dimension_semantics=("parallel",),
        ),
    )(x, w1, b1, w2, b2, w3, b3)

    return out_slab.reshape(B, 1)


def init_params(key, obs_size):
    """Deterministic synthetic init (shapes match the nn.Linear layers)."""
    k = jax.random.split(key, 6)
    w1 = jax.random.normal(k[0], (obs_size, HID_SIZE), jnp.float32) / jnp.sqrt(obs_size)
    b1 = jax.random.normal(k[1], (1, HID_SIZE), jnp.float32) * 0.1
    w2 = jax.random.normal(k[2], (HID_SIZE, HID_SIZE), jnp.float32) / jnp.sqrt(HID_SIZE)
    b2 = jax.random.normal(k[3], (1, HID_SIZE), jnp.float32) * 0.1
    # torch Linear(64, 1).weight has shape (1, 64); keep that row layout.
    w3 = jax.random.normal(k[4], (1, HID_SIZE), jnp.float32) / jnp.sqrt(HID_SIZE)
    b3 = jax.random.normal(k[5], (1, 1), jnp.float32) * 0.1
    return (w1, b1, w2, b2, w3, b3)


def reference_forward(x, params):
    w1, b1, w2, b2, w3, b3 = params
    h1 = jnp.maximum(x @ w1 + b1, 0.0)
    h2 = jnp.maximum(h1 @ w2 + b2, 0.0)
    return h2 @ w3.T + b3


if __name__ == "__main__":
    key = jax.random.PRNGKey(0)
    k_x1, k_x2, k_p1, k_p2 = jax.random.split(key, 4)

    # Small, deliberately unaligned shapes (B=6, obs=10): no wrapper padding at
    # all -- the single tile's block dims equal the full array dims.
    batch, obs_size = 6, 10
    x = jax.random.normal(k_x1, (batch, obs_size), jnp.float32)
    params = init_params(k_p1, obs_size)
    out = jax.block_until_ready(model_critic_forward(x, params))
    ref = reference_forward(x, params)
    assert out.shape == (batch, 1)
    assert jnp.allclose(out, ref, atol=1e-4, rtol=1e-4), "mismatch vs reference (small)"

    # Multi-tile path with a partial trailing block: B=300, obs=200, tile=128
    # (grid = 3; last block holds 44 valid rows, the rest is unspecified data
    # whose outputs are clipped -- rows are independent so valid rows are exact).
    batch2, obs2 = 300, 200
    x2 = jax.random.normal(k_x2, (batch2, obs2), jnp.float32)
    params2 = init_params(k_p2, obs2)
    out2 = jax.block_until_ready(model_critic_forward(x2, params2, batch_tile=128))
    ref2 = reference_forward(x2, params2)
    assert out2.shape == (batch2, 1)
    assert jnp.allclose(out2, ref2, atol=1e-3, rtol=1e-3), "mismatch vs reference (tiled)"

    # Auto-tile path (single large tile, or 2-way split on multi-TC chips).
    out2b = jax.block_until_ready(model_critic_forward(x2, params2))
    assert jnp.allclose(out2b, ref2, atol=1e-3, rtol=1e-3), "mismatch vs reference (auto)"

    # Opt-in bf16-weight path: loosened tolerance for bf16 rounding of weights
    # and of the in-kernel activation casts.
    out_bf = jax.block_until_ready(model_critic_forward(x2, params2, use_bf16=True))
    assert jnp.allclose(out_bf, ref2, atol=5e-2, rtol=5e-2), "mismatch vs reference (bf16)"

    print("KERNEL_OK")
</pallas_src>

<mosaic_0001>
module attributes {stable_mosaic.version = 11 : i64} {
  func.func @critic_kernel(%arg0: i32, %arg1: memref<6x10xf32, #tpu.memory_space<vmem>>, %arg2: memref<10x64xf32, #tpu.memory_space<vmem>>, %arg3: memref<1x64xf32, #tpu.memory_space<vmem>>, %arg4: memref<64x64xf32, #tpu.memory_space<vmem>>, %arg5: memref<1x64xf32, #tpu.memory_space<vmem>>, %arg6: memref<1x64xf32, #tpu.memory_space<vmem>>, %arg7: memref<1x1xf32, #tpu.memory_space<vmem>>, %arg8: memref<1x6xf32, #tpu.memory_space<vmem>>) attributes {dimension_semantics = [#tpu.dimension_semantics<parallel>], iteration_bounds = array<i64: 1>, scalar_prefetch = 0 : i64, scratch_operands = 0 : i64, tpu.core_type = #tpu.core_type<tc>, window_params = [{transform_indices = @transform_0, window_bounds = array<i64: 6, 10>}, {pipeline_mode = #tpu.pipeline_mode<synchronous>, transform_indices = @transform_1, window_bounds = array<i64: 10, 64>}, {pipeline_mode = #tpu.pipeline_mode<synchronous>, transform_indices = @transform_2, window_bounds = array<i64: 1, 64>}, {pipeline_mode = #tpu.pipeline_mode<synchronous>, transform_indices = @transform_3, window_bounds = array<i64: 64, 64>}, {pipeline_mode = #tpu.pipeline_mode<synchronous>, transform_indices = @transform_4, window_bounds = array<i64: 1, 64>}, {pipeline_mode = #tpu.pipeline_mode<synchronous>, transform_indices = @transform_5, window_bounds = array<i64: 1, 64>}, {pipeline_mode = #tpu.pipeline_mode<synchronous>, transform_indices = @transform_6, window_bounds = array<i64: 1, 1>}, {transform_indices = @transform_7, window_bounds = array<i64: 1, 6>}]} {
    %c0 = arith.constant 0 : index
    %c0_0 = arith.constant 0 : index
    %0 = vector.load %arg1[%c0, %c0_0] : memref<6x10xf32, #tpu.memory_space<vmem>>, vector<6x10xf32>
    %c0_1 = arith.constant 0 : index
    %c0_2 = arith.constant 0 : index
    %1 = vector.load %arg2[%c0_1, %c0_2] : memref<10x64xf32, #tpu.memory_space<vmem>>, vector<10x64xf32>
    %cst = arith.constant dense<0.000000e+00> : vector<6x64xf32>
    %2 = tpu.matmul %0, %1, %cst {dimension_numbers = #tpu.dot_dimension_numbers<[1], [0], [0], [1], [0, 0, 1, 1], [], []>} : vector<6x10xf32>, vector<10x64xf32>, vector<6x64xf32> -> vector<6x64xf32>
    %c0_3 = arith.constant 0 : index
    %c0_4 = arith.constant 0 : index
    %3 = vector.load %arg3[%c0_3, %c0_4] : memref<1x64xf32, #tpu.memory_space<vmem>>, vector<1x64xf32>
    %4 = vector.broadcast %3 : vector<1x64xf32> to vector<6x64xf32>
    %5 = arith.addf %2, %4 : vector<6x64xf32>
    %cst_5 = arith.constant 0.000000e+00 : f32
    %6 = vector.broadcast %cst_5 : f32 to vector<6x64xf32>
    %7 = arith.maximumf %5, %6 : vector<6x64xf32>
    %c0_6 = arith.constant 0 : index
    %c0_7 = arith.constant 0 : index
    %8 = vector.load %arg4[%c0_6, %c0_7] : memref<64x64xf32, #tpu.memory_space<vmem>>, vector<64x64xf32>
    %cst_8 = arith.constant dense<0.000000e+00> : vector<6x64xf32>
    %9 = tpu.matmul %7, %8, %cst_8 {dimension_numbers = #tpu.dot_dimension_numbers<[1], [0], [0], [1], [0, 0, 1, 1], [], []>} : vector<6x64xf32>, vector<64x64xf32>, vector<6x64xf32> -> vector<6x64xf32>
    %c0_9 = arith.constant 0 : index
    %c0_10 = arith.constant 0 : index
    %10 = vector.load %arg5[%c0_9, %c0_10] : memref<1x64xf32, #tpu.memory_space<vmem>>, vector<1x64xf32>
    %11 = vector.broadcast %10 : vector<1x64xf32> to vector<6x64xf32>
    %12 = arith.addf %9, %11 : vector<6x64xf32>
    %cst_11 = arith.constant 0.000000e+00 : f32
    %13 = vector.broadcast %cst_11 : f32 to vector<6x64xf32>
    %14 = arith.maximumf %12, %13 : vector<6x64xf32>
    %c0_12 = arith.constant 0 : index
    %c0_13 = arith.constant 0 : index
    %15 = vector.load %arg6[%c0_12, %c0_13] : memref<1x64xf32, #tpu.memory_space<vmem>>, vector<1x64xf32>
    %cst_14 = arith.constant dense<0.000000e+00> : vector<1x6xf32>
    %16 = tpu.matmul %15, %14, %cst_14 {dimension_numbers = #tpu.dot_dimension_numbers<[1], [1], [0], [0], [0, 0, 1, 0], [], []>} : vector<1x64xf32>, vector<6x64xf32>, vector<1x6xf32> -> vector<1x6xf32>
    %c0_15 = arith.constant 0 : index
    %c0_16 = arith.constant 0 : index
    %17 = vector.load %arg7[%c0_15, %c0_16] : memref<1x1xf32, #tpu.memory_space<vmem>>, vector<1x1xf32>
    %18 = vector.broadcast %17 : vector<1x1xf32> to vector<1x6xf32>
    %19 = arith.addf %16, %18 : vector<1x6xf32>
    %c0_17 = arith.constant 0 : index
    %c0_18 = arith.constant 0 : index
    %20 = vector.load %arg8[%c0_17, %c0_18] : memref<1x6xf32, #tpu.memory_space<vmem>>, vector<1x6xf32>
    tpu.vector_store %arg8[%c0_17, %c0_18], %19 {strides = array<i32>} : memref<1x6xf32, #tpu.memory_space<vmem>>, vector<1x6xf32>,
    return
  }
  func.func @transform_0(%arg0: i32) -> (i32, i32) {
    %c0_i32 = arith.constant 0 : i32
    %c0_i32_0 = arith.constant 0 : i32
    return %arg0, %c0_i32 : i32, i32
  }
  func.func @transform_1(%arg0: i32) -> (i32, i32) {
    %c0_i32 = arith.constant 0 : i32
    %c0_i32_0 = arith.constant 0 : i32
    %c0_i32_1 = arith.constant 0 : i32
    return %c0_i32, %c0_i32_0 : i32, i32
  }
  func.func @transform_2(%arg0: i32) -> (i32, i32) {
    %c0_i32 = arith.constant 0 : i32
    %c0_i32_0 = arith.constant 0 : i32
    %c0_i32_1 = arith.constant 0 : i32
    return %c0_i32, %c0_i32_0 : i32, i32
  }
  func.func @transform_3(%arg0: i32) -> (i32, i32) {
    %c0_i32 = arith.constant 0 : i32
    %c0_i32_0 = arith.constant 0 : i32
    %c0_i32_1 = arith.constant 0 : i32
    return %c0_i32, %c0_i32_0 : i32, i32
  }
  func.func @transform_4(%arg0: i32) -> (i32, i32) {
    %c0_i32 = arith.constant 0 : i32
    %c0_i32_0 = arith.constant 0 : i32
    %c0_i32_1 = arith.constant 0 : i32
    return %c0_i32, %c0_i32_0 : i32, i32
  }
  func.func @transform_5(%arg0: i32) -> (i32, i32) {
    %c0_i32 = arith.constant 0 : i32
    %c0_i32_0 = arith.constant 0 : i32
    %c0_i32_1 = arith.constant 0 : i32
    return %c0_i32, %c0_i32_0 : i32, i32
  }
  func.func @transform_6(%arg0: i32) -> (i32, i32) {
    %c0_i32 = arith.constant 0 : i32
    %c0_i32_0 = arith.constant 0 : i32
    %c0_i32_1 = arith.constant 0 : i32
    return %c0_i32, %c0_i32_0 : i32, i32
  }
  func.func @transform_7(%arg0: i32) -> (i32, i32) {
    %c0_i32 = arith.constant 0 : i32
    %c0_i32_0 = arith.constant 0 : i32
    return %c0_i32, %arg0 : i32, i32
  }
}

</mosaic_0001>

<llo_original>
// kernel: tpu_custom_call.1
$region0: #{tpu_custom_call.1}
  #allocation0 [shape = 'u32[]', space=smem, size = 0x4, offset = 0x4, fixed_abs, tag = 'smem constant byte address 0x4 - core index']
  #allocation1 [shape = 'u32[144,128]{1,0:T(1,128)}', space=vmem, size = 0x12000, scoped, tag = 'internal scratch']
  #allocation2 [shape = 'f32[1,1]{1,0:T(1,128)S(1)}', space=vmem, size = 0x200, scoped, tag = 'scoped memory for tpu_custom_call.1']
  %s0 = inlined_call_operand.hbm [shape: f32[6,10], index: 0, kind: input, shape index: {}]
  %s1 = inlined_call_operand.hbm [shape: f32[10,64], index: 1, kind: input, shape index: {}]
  %s2 = inlined_call_operand.vmem [shape: f32[1,64], index: 2, kind: input, shape index: {}]
  %s3 = inlined_call_operand.hbm [shape: f32[64,64], index: 3, kind: input, shape index: {}]
  %s4 = inlined_call_operand.vmem [shape: f32[1,64], index: 4, kind: input, shape index: {}]
  %s5 = inlined_call_operand.vmem [shape: f32[1,64], index: 5, kind: input, shape index: {}]
  %s6 = inlined_call_operand.<no memory space> [shape: f32[1,1], index: 6, kind: input, shape index: {}]
  %s7 = inlined_call_operand.hbm [shape: f32[1,6], index: 7, kind: output, shape index: {}]
  %s8 = sld [smem:[#allocation0]]
  $region50: #{tpu_custom_call.1} parent=0
    _
  %s10 = ssub.s32 1, %s8
  %s11 = scalar_select 0, %s10, %s8
  %v12 = vstv %s6
  %13 = vst [vmem:[#allocation2] sm:$0x1] %v12
  $region1: #{tpu_custom_call.1} parent=0
    #allocation3 [shape = 'u8[4096]{0}', space=vmem, size = 0x1000, scoped, tag = 'input window, operand 0, single buffered']
    #allocation4 [shape = 's32[1]{0}', space=sflag, size = 0x4, scoped, tag = 'scoped memory for tpu_custom_call.1']
    #allocation5 [shape = 's32[1]{0}', space=sflag, size = 0x4, scoped, tag = 'scoped memory for tpu_custom_call.1']
    #allocation6 [shape = 'u8[8192]{0}', space=vmem, size = 0x2000, scoped, tag = 'input window, operand 1, single buffered']
    #allocation7 [shape = 's32[1]{0}', space=sflag, size = 0x4, scoped, tag = 'scoped memory for tpu_custom_call.1']
    #allocation8 [shape = 'u8[32768]{0}', space=vmem, size = 0x8000, scoped, tag = 'input window, operand 3, single buffered']
    #allocation9 [shape = 'u8[512]{0}', space=vmem, size = 0x400, scoped, tag = 'output window, operand 0, single buffered']
    %14 = vsyncpa [#allocation4], 0
    %15 = vsyncpa [#allocation7], 0
    %16 = vsyncpa [#allocation5], 0
    // Predicated region
    $region2: #{tpu_custom_call.1} parent=1 // pred_check
      _
    $region3: #{tpu_custom_call.1} parent=1 // pred_check_branch
      %18 = sbr.rel (0) target = $region5
    $region4: #{tpu_custom_call.1} parent=1 // pred_region
      %s20 = ssub.s32 128, 128
      %21 = vsyncadd [#allocation4], %s20
      %s23 = sshll.u32 [#allocation3], 4
      %s24 = int_to_ptr.vmem [resolvable:$true] %s23
      %26 = dma.hbm_to_vmem [thread:$0]  %s0, 128, %s24, [#allocation4]
    $region5: #{tpu_custom_call.1} parent=1 // pred_fallthru
      _
    // Predicated region
    $region6: #{tpu_custom_call.1} parent=1 // pred_check
      _
    $region7: #{tpu_custom_call.1} parent=1 // pred_check_branch
      %28 = sbr.rel (0) target = $region9
    $region8: #{tpu_custom_call.1} parent=1 // pred_region
      %s30 = ssub.s32 256, 256
      %31 = vsyncadd [#allocation7], %s30
      %s32 = sshll.u32 [#allocation6], 4
      %s33 = int_to_ptr.vmem [resolvable:$true] %s32
      %38 = dma.hbm_to_vmem [thread:$0]  %s1, 256, %s33, [#allocation7], 128, 128, 8
    $region9: #{tpu_custom_call.1} parent=1 // pred_fallthru
      _
    // Predicated region
    $region10: #{tpu_custom_call.1} parent=1 // pred_check
      _
    $region11: #{tpu_custom_call.1} parent=1 // pred_check_branch
      %40 = sbr.rel (0) target = $region13
    $region12: #{tpu_custom_call.1} parent=1 // pred_region
      _
    $region13: #{tpu_custom_call.1} parent=1 // pred_fallthru
      _
    // Predicated region
    $region14: #{tpu_custom_call.1} parent=1 // pred_check
      _
    $region15: #{tpu_custom_call.1} parent=1 // pred_check_branch
      %42 = sbr.rel (0) target = $region17
    $region16: #{tpu_custom_call.1} parent=1 // pred_region
      %s44 = ssub.s32 1024, 1024
      %45 = vsyncadd [#allocation7], %s44
      %s46 = sshll.u32 [#allocation8], 4
      %s47 = int_to_ptr.vmem [resolvable:$true] %s46
      %52 = dma.hbm_to_vmem [thread:$0]  %s3, 1024, %s47, [#allocation7], 128, 128, 8
    $region17: #{tpu_custom_call.1} parent=1 // pred_fallthru
      _
    // Predicated region
    $region18: #{tpu_custom_call.1} parent=1 // pred_check
      _
    $region19: #{tpu_custom_call.1} parent=1 // pred_check_branch
      %54 = sbr.rel (0) target = $region21
    $region20: #{tpu_custom_call.1} parent=1 // pred_region
      _
    $region21: #{tpu_custom_call.1} parent=1 // pred_fallthru
      _
    // Predicated region
    $region22: #{tpu_custom_call.1} parent=1 // pred_check
      _
    $region23: #{tpu_custom_call.1} parent=1 // pred_check_branch
      %56 = sbr.rel (0) target = $region25
    $region24: #{tpu_custom_call.1} parent=1 // pred_region
      _
    $region25: #{tpu_custom_call.1} parent=1 // pred_fallthru
      _
    // Predicated region
    $region26: #{tpu_custom_call.1} parent=1 // pred_check
      _
    $region27: #{tpu_custom_call.1} parent=1 // pred_check_branch
      %58 = sbr.rel (0) target = $region29
    $region28: #{tpu_custom_call.1} parent=1 // pred_region
      _
    $region29: #{tpu_custom_call.1} parent=1 // pred_fallthru
      _
    // Predicated region
    $region30: #{tpu_custom_call.1} parent=1 // pred_check
      _
    $region31: #{tpu_custom_call.1} parent=1 // pred_check_branch
      %60 = sbr.rel (0) target = $region33
    $region32: #{tpu_custom_call.1} parent=1 // pred_region
      %61 = dma.done [#allocation4], 128
    $region33: #{tpu_custom_call.1} parent=1 // pred_fallthru
      _
    // Predicated region
    $region34: #{tpu_custom_call.1} parent=1 // pred_check
      _
    $region35: #{tpu_custom_call.1} parent=1 // pred_check_branch
      %63 = sbr.rel (0) target = $region37
    $region36: #{tpu_custom_call.1} parent=1 // pred_region
      %64 = dma.done [#allocation7], 256
    $region37: #{tpu_custom_call.1} parent=1 // pred_fallthru
      _
    // Predicated region
    $region38: #{tpu_custom_call.1} parent=1 // pred_check
      _
    $region39: #{tpu_custom_call.1} parent=1 // pred_check_branch
      %66 = sbr.rel (0) target = $region41
    $region40: #{tpu_custom_call.1} parent=1 // pred_region
      %67 = dma.done [#allocation7], 1024
    $region41: #{tpu_custom_call.1} parent=1 // pred_fallthru
      _
    %v68 = vld [vmem:[#allocation3] sm:$0x3f]
    %v69 = vld [vmem:[#allocation6] sm:$0xff]
    %v70 = vld [vmem:[#allocation6 + $0x8] sm:$0x3]
    %v71 = vld [vmem:[%s2] sm:$0x1]
    %v73 = vlaneseq
    %v74 = vshrl.u32 %v73, 7
    %v75 = vsub.s32 0, %v74
    %v76 = vrot.slane %v71, %v75
    %vm78 = vcmask 80896
    %v80 = vsel %vm78, %v68, 0
    %vm82 = vcmask 1041408
    %v84 = vsel %vm82, %v70, 0
    %86 = vmatprep.subr.mxu0 0.0
    %87 = vmatpush1.msra.mxu0 %v69
    %88 = vmatprep.subr.mxu0 0.0
    %89 = vmatpush1.msra.mxu0 %v84
    %90 = vmatprep.subr.mxu0 0.0
    %91 = vmatpush1.msra.mxu0 0.0
    %92 = vmatprep.subr.mxu0 0.0
    %93 = vmatpush1.msra.mxu0 0.0
    %94 = vmatprep.subr.mxu0 0.0
    %95 = vmatpush1.msra.mxu0 0.0
    %96 = vmatprep.subr.mxu0 0.0
    %97 = vmatpush1.msra.mxu0 0.0
    %98 = vmatprep.subr.mxu0 0.0
    %99 = vmatpush1.msra.mxu0 0.0
    %100 = vmatprep.subr.mxu0 0.0
    %101 = vmatpush1.msra.mxu0 0.0
    %102 = vmatprep.subr.mxu0 0.0
    %103 = vmatpush1.msra.mxu0 0.0
    %104 = vmatprep.subr.mxu0 0.0
    %105 = vmatpush1.msra.mxu0 0.0
    %106 = vmatprep.subr.mxu0 0.0
    %107 = vmatpush1.msra.mxu0 0.0
    %108 = vmatprep.subr.mxu0 0.0
    %109 = vmatpush1.msra.mxu0 0.0
    %110 = vmatprep.subr.mxu0 0.0
    %111 = vmatpush1.msra.mxu0 0.0
    %112 = vmatprep.subr.mxu0 0.0
    %113 = vmatpush1.msra.mxu0 0.0
    %114 = vmatprep.subr.mxu0 0.0
    %115 = vmatpush1.msra.mxu0 0.0
    %116 = vmatprep.subr.mxu0 0.0
    %117 = vmatpush1.msra.mxu0 0.0
    %118 = vmatprep.subr.mxu0 0.0
    %119 = vmatpush1.msra.mxu0 0.0
    %120 = vmatprep.subr.mxu0 0.0
    %121 = vmatpush1.msra.mxu0 0.0
    %122 = vmatprep.subr.mxu0 0.0
    %123 = vmatpush1.msra.mxu0 0.0
    %124 = vmatprep.subr.mxu0 0.0
    %125 = vmatpush1.msra.mxu0 0.0
    %126 = vmatprep.subr.mxu0 0.0
    %127 = vmatpush1.msra.mxu0 0.0
    %128 = vmatprep.subr.mxu0 0.0
    %129 = vmatpush1.msra.mxu0 0.0
    %130 = vmatprep.subr.mxu0 0.0
    %131 = vmatpush1.msra.mxu0 0.0
    %132 = vmatprep.subr.mxu0 0.0
    %133 = vmatpush1.msra.mxu0 0.0
    %134 = vmatprep.subr.mxu0 0.0
    %135 = vmatpush1.msra.mxu0 0.0
    %136 = vmatprep.subr.mxu0 0.0
    %137 = vmatpush1.msra.mxu0 0.0
    %138 = vmatprep.subr.mxu0 0.0
    %139 = vmatpush1.msra.mxu0 0.0
    %140 = vmatprep.subr.mxu0 0.0
    %141 = vmatpush1.msra.mxu0 0.0
    %142 = vmatprep.subr.mxu0 0.0
    %143 = vmatpush1.msra.mxu0 0.0
    %144 = vmatprep.subr.mxu0 0.0
    %145 = vmatpush1.msra.mxu0 0.0
    %146 = vmatprep.subr.mxu0 0.0
    %147 = vmatpush1.msra.mxu0 0.0
    %148 = vmatprep.subr.mxu0 0.0
    %149 = vmatpush1.msra.mxu0 0.0
    %150 = vmatprep.mubr.f32.mxu0 0.0
    %151 = vmatmul.mubr.f32.gmra.mrb[0].mxu0 %v80
    %v152 = vpop.f32.mrb[0].mxu0
    %v153 = vadd.f32 %v76, %v152
    %v154 = vpop.f32.mrb[0].mxu0
    %155 = vdwg.mxu0
    %v156 = vmax.f32 %v153, 0.0
    %v157 = vld [vmem:[#allocation8] sm:$0xff]
    %v158 = vld [vmem:[#allocation8 + $0x8] sm:$0xff]
    %v159 = vld [vmem:[#allocation8 + $0x10] sm:$0xff]
    %v160 = vld [vmem:[#allocation8 + $0x18] sm:$0xff]
    %v161 = vld [vmem:[#allocation8 + $0x20] sm:$0xff]
    %v162 = vld [vmem:[#allocation8 + $0x28] sm:$0xff]
    %v163 = vld [vmem:[#allocation8 + $0x30] sm:$0xff]
    %v164 = vld [vmem:[#allocation8 + $0x38] sm:$0xff]
    %v165 = vld [vmem:[%s4] sm:$0x1]
    %v167 = vlaneseq
    %v168 = vshrl.u32 %v167, 7
    %v169 = vsub.s32 0, %v168
    %v170 = vrot.slane %v165, %v169
    %vm172 = vcmask 523264
    %v174 = vsel %vm172, %v156, 0
    %176 = vmatprep.subr.mxu0 0.0
    %177 = vmatpush1.msra.mxu0 %v157
    %178 = vmatprep.subr.mxu0 0.0
    %179 = vmatpush1.msra.mxu0 %v158
    %180 = vmatprep.subr.mxu0 0.0
    %181 = vmatpush1.msra.mxu0 %v159
    %182 = vmatprep.subr.mxu0 0.0
    %183 = vmatpush1.msra.mxu0 %v160
    %184 = vmatprep.subr.mxu0 0.0
    %185 = vmatpush1.msra.mxu0 %v161
    %186 = vmatprep.subr.mxu0 0.0
    %187 = vmatpush1.msra.mxu0 %v162
    %188 = vmatprep.subr.mxu0 0.0
    %189 = vmatpush1.msra.mxu0 %v163
    %190 = vmatprep.subr.mxu0 0.0
    %191 = vmatpush1.msra.mxu0 %v164
    %192 = vmatprep.subr.mxu0 0.0
    %193 = vmatpush1.msra.mxu0 0.0
    %194 = vmatprep.subr.mxu0 0.0
    %195 = vmatpush1.msra.mxu0 0.0
    %196 = vmatprep.subr.mxu0 0.0
    %197 = vmatpush1.msra.mxu0 0.0
    %198 = vmatprep.subr.mxu0 0.0
    %199 = vmatpush1.msra.mxu0 0.0
    %200 = vmatprep.subr.mxu0 0.0
    %201 = vmatpush1.msra.mxu0 0.0
    %202 = vmatprep.subr.mxu0 0.0
    %203 = vmatpush1.msra.mxu0 0.0
    %204 = vmatprep.subr.mxu0 0.0
    %205 = vmatpush1.msra.mxu0 0.0
    %206 = vmatprep.subr.mxu0 0.0
    %207 = vmatpush1.msra.mxu0 0.0
    %208 = vmatprep.subr.mxu0 0.0
    %209 = vmatpush1.msra.mxu0 0.0
    %210 = vmatprep.subr.mxu0 0.0
    %211 = vmatpush1.msra.mxu0 0.0
    %212 = vmatprep.subr.mxu0 0.0
    %213 = vmatpush1.msra.mxu0 0.0
    %214 = vmatprep.subr.mxu0 0.0
    %215 = vmatpush1.msra.mxu0 0.0
    %216 = vmatprep.subr.mxu0 0.0
    %217 = vmatpush1.msra.mxu0 0.0
    %218 = vmatprep.subr.mxu0 0.0
    %219 = vmatpush1.msra.mxu0 0.0
    %220 = vmatprep.subr.mxu0 0.0
    %221 = vmatpush1.msra.mxu0 0.0
    %222 = vmatprep.subr.mxu0 0.0
    %223 = vmatpush1.msra.mxu0 0.0
    %224 = vmatprep.subr.mxu0 0.0
    %225 = vmatpush1.msra.mxu0 0.0
    %226 = vmatprep.subr.mxu0 0.0
    %227 = vmatpush1.msra.mxu0 0.0
    %228 = vmatprep.subr.mxu0 0.0
    %229 = vmatpush1.msra.mxu0 0.0
    %230 = vmatprep.subr.mxu0 0.0
    %231 = vmatpush1.msra.mxu0 0.0
    %232 = vmatprep.subr.mxu0 0.0
    %233 = vmatpush1.msra.mxu0 0.0
    %234 = vmatprep.subr.mxu0 0.0
    %235 = vmatpush1.msra.mxu0 0.0
    %236 = vmatprep.subr.mxu0 0.0
    %237 = vmatpush1.msra.mxu0 0.0
    %238 = vmatprep.subr.mxu0 0.0
    %239 = vmatpush1.msra.mxu0 0.0
    %240 = vmatprep.mubr.f32.mxu0 0.0
    %241 = vmatmul.mubr.f32.gmra.mrb[0].mxu0 %v174
    %v242 = vpop.f32.mrb[0].mxu0
    %v243 = vadd.f32 %v170, %v242
    %v244 = vpop.f32.mrb[0].mxu0
    %245 = vdwg.mxu0
    %v246 = vmax.f32 %v243, 0.0
    %v247 = vld [vmem:[%s5] sm:$0x1]
    %v248 = vld [vmem:[#allocation2] sm:$0x1]
    %250 = vset.pattern.permute.xlu0 0
    %251 = vperm.xlu0 %250, %v248
    %v252 = vpop.permute.xlu0 %251
    %v254 = vlaneseq
    %v255 = vshrl.u32 %v254, 7
    %v256 = vsub.s32 0, %v255
    %v257 = vrot.slane %v252, %v256
    %v259 = vsel %vm172, %v247, 0
    %v262 = vsel %vm172, %v246, 0
    %264 = vmatprep.subr.mxu0 0.0
    %265 = vmatpush1.xpose.msra.mxu0 %v262
    %266 = vmatprep.subr.mxu0 0.0
    %267 = vmatpush1.xpose.msra.mxu0 0.0
    %268 = vmatprep.subr.mxu0 0.0
    %269 = vmatpush1.xpose.msra.mxu0 0.0
    %270 = vmatprep.subr.mxu0 0.0
    %271 = vmatpush1.xpose.msra.mxu0 0.0
    %272 = vmatprep.subr.mxu0 0.0
    %273 = vmatpush1.xpose.msra.mxu0 0.0
    %274 = vmatprep.subr.mxu0 0.0
    %275 = vmatpush1.xpose.msra.mxu0 0.0
    %276 = vmatprep.subr.mxu0 0.0
    %277 = vmatpush1.xpose.msra.mxu0 0.0
    %278 = vmatprep.subr.mxu0 0.0
    %279 = vmatpush1.xpose.msra.mxu0 0.0
    %280 = vmatprep.subr.mxu0 0.0
    %281 = vmatpush1.xpose.msra.mxu0 0.0
    %282 = vmatprep.subr.mxu0 0.0
    %283 = vmatpush1.xpose.msra.mxu0 0.0
    %284 = vmatprep.subr.mxu0 0.0
    %285 = vmatpush1.xpose.msra.mxu0 0.0
    %286 = vmatprep.subr.mxu0 0.0
    %287 = vmatpush1.xpose.msra.mxu0 0.0
    %288 = vmatprep.subr.mxu0 0.0
    %289 = vmatpush1.xpose.msra.mxu0 0.0
    %290 = vmatprep.subr.mxu0 0.0
    %291 = vmatpush1.xpose.msra.mxu0 0.0
    %292 = vmatprep.subr.mxu0 0.0
    %293 = vmatpush1.xpose.msra.mxu0 0.0
    %294 = vmatprep.subr.mxu0 0.0
    %295 = vmatpush1.xpose.msra.mxu0 0.0
    %296 = vmatprep.subr.mxu0 0.0
    %297 = vmatpush1.xpose.msra.mxu0 0.0
    %298 = vmatprep.subr.mxu0 0.0
    %299 = vmatpush1.xpose.msra.mxu0 0.0
    %300 = vmatprep.subr.mxu0 0.0
    %301 = vmatpush1.xpose.msra.mxu0 0.0
    %302 = vmatprep.subr.mxu0 0.0
    %303 = vmatpush1.xpose.msra.mxu0 0.0
    %304 = vmatprep.subr.mxu0 0.0
    %305 = vmatpush1.xpose.msra.mxu0 0.0
    %306 = vmatprep.subr.mxu0 0.0
    %307 = vmatpush1.xpose.msra.mxu0 0.0
    %308 = vmatprep.subr.mxu0 0.0
    %309 = vmatpush1.xpose.msra.mxu0 0.0
    %310 = vmatprep.subr.mxu0 0.0
    %311 = vmatpush1.xpose.msra.mxu0 0.0
    %312 = vmatprep.subr.mxu0 0.0
    %313 = vmatpush1.xpose.msra.mxu0 0.0
    %314 = vmatprep.subr.mxu0 0.0
    %315 = vmatpush1.xpose.msra.mxu0 0.0
    %316 = vmatprep.subr.mxu0 0.0
    %317 = vmatpush1.xpose.msra.mxu0 0.0
    %318 = vmatprep.subr.mxu0 0.0
    %319 = vmatpush1.xpose.msra.mxu0 0.0
    %320 = vmatprep.subr.mxu0 0.0
    %321 = vmatpush1.xpose.msra.mxu0 0.0
    %322 = vmatprep.subr.mxu0 0.0
    %323 = vmatpush1.xpose.msra.mxu0 0.0
    %324 = vmatprep.subr.mxu0 0.0
    %325 = vmatpush1.xpose.msra.mxu0 0.0
    %326 = vmatprep.subr.mxu0 0.0
    %327 = vmatpush1.xpose.msra.mxu0 0.0
    %328 = vmatprep.mubr.f32.mxu0 0.0
    %329 = vmatmul.mubr.f32.gmra.mrb[0].mxu0 %v259
    %v330 = vpop.f32.mrb[0].mxu0
    %v331 = vadd.f32 %v257, %v330
    %v332 = vpop.f32.mrb[0].mxu0
    %333 = vdwg.mxu0
    %vm334 = vcmask 40960
    %335 = vst.msk [vmem:[#allocation9] sm:$0x1] %vm334, %v331
    // Predicated region
    $region42: #{tpu_custom_call.1} parent=1 // pred_check
      _
    $region43: #{tpu_custom_call.1} parent=1 // pred_check_branch
      %337 = sbr.rel (0) target = $region45
    $region44: #{tpu_custom_call.1} parent=1 // pred_region
      %s339 = ssub.s32 16, 16
      %340 = vsyncadd [#allocation5], %s339
      %s342 = sshll.u32 [#allocation9], 4
      %s343 = int_to_ptr.vmem [resolvable:$true] %s342
      %345 = dma.vmem_to_hbm [thread:$0]  %s343, 16, %s7, [#allocation5]
    $region45: #{tpu_custom_call.1} parent=1 // pred_fallthru
      _
    // Predicated region
    $region46: #{tpu_custom_call.1} parent=1 // pred_check
      _
    $region47: #{tpu_custom_call.1} parent=1 // pred_check_branch
      %347 = sbr.rel (0) target = $region49
    $region48: #{tpu_custom_call.1} parent=1 // pred_region
      %348 = dma.done [#allocation5], 16
    $region49: #{tpu_custom_call.1} parent=1 // pred_fallthru
      _
    %349 = vsyncpa [#allocation4], 1
    %350 = vsyncpa [#allocation7], 1
    %351 = vsyncpa [#allocation5], 1

</llo_original>
